<compile_context>
chip_gen: v6e
topology: v6e:2x2x1
jax: 0.10.0
libtpu: 0.0.40
codegen_flags: <defaults>
</compile_context>

<pallas_src>
import functools

import numpy as np
import jax
import jax.numpy as jnp
from jax.experimental import pallas as pl
from jax.experimental.pallas import tpu as pltpu

try:
    from scipy.optimize import linear_sum_assignment
    _HAVE_SCIPY = True
except Exception:  # pragma: no cover
    _HAVE_SCIPY = False


def _round_up(x, m):
    return ((x + m - 1) // m) * m


def _cost_kernel(logits_ref, boxes_ref, onehot_ref, tboxes_ref, cost_ref,
                 *, class_weight, bbox_weight, l1_weight):
    # logits_ref:  [TILE_N, C]   pred_logits tile for image b
    # boxes_ref:   [TILE_N, 4]   pred_boxes tile (cxcywh)
    # onehot_ref:  [C, T_pad]    per-image one-hot of target labels (padded)
    # tboxes_ref:  [4, T_pad]    per-image target boxes (cxcywh), transposed
    # cost_ref:    [TILE_N, T_pad]
    logits = logits_ref[...].astype(jnp.float32)

    # softmax over classes; normalization deferred past the one-hot matmul so
    # the per-class divide becomes a single [TILE_N, T_pad] multiply fused
    # with the class weight.
    m = jnp.max(logits, axis=-1, keepdims=True)
    e = jnp.exp(logits - m)                                   # [TN, C]
    denom = jnp.sum(e, axis=-1, keepdims=True)                # [TN, 1]
    inv_denom = pl.reciprocal(denom, approx=True)             # EUP

    # class_cost = -softmax(logits)[:, tgt_ids]  (gather via one-hot matmul)
    onehot = onehot_ref[...].astype(jnp.float32)              # [C, Tp]
    unnorm = jnp.dot(e, onehot,
                     preferred_element_type=jnp.float32)      # [TN, Tp] (MXU)
    class_term = (-class_weight) * unnorm * inv_denom

    ob = boxes_ref[...].astype(jnp.float32)                   # [TN, 4] cxcywh
    tbt = tboxes_ref[...].astype(jnp.float32)                 # [4, Tp] cxcywh

    # out boxes: cxcywh -> xyxy, each component [TN, 1]
    ocx, ocy, ow, oh = ob[:, 0:1], ob[:, 1:2], ob[:, 2:3], ob[:, 3:4]
    ox0 = ocx - 0.5 * ow
    oy0 = ocy - 0.5 * oh
    ox1 = ocx + 0.5 * ow
    oy1 = ocy + 0.5 * oh

    # target boxes: cxcywh -> xyxy, each component [1, Tp]
    tcx, tcy, tw, th = tbt[0:1, :], tbt[1:2, :], tbt[2:3, :], tbt[3:4, :]
    tx0 = tcx - 0.5 * tw
    ty0 = tcy - 0.5 * th
    tx1 = tcx + 0.5 * tw
    ty1 = tcy + 0.5 * th

    area_o = (ox1 - ox0) * (oy1 - oy0)                        # [TN, 1]
    area_t = (tx1 - tx0) * (ty1 - ty0)                        # [1, Tp]

    # pairwise IoU  (broadcast [TN,1] vs [1,Tp] -> [TN,Tp])
    lt_x = jnp.maximum(ox0, tx0)
    lt_y = jnp.maximum(oy0, ty0)
    rb_x = jnp.minimum(ox1, tx1)
    rb_y = jnp.minimum(oy1, ty1)
    inter = jnp.maximum(rb_x - lt_x, 0.0) * jnp.maximum(rb_y - lt_y, 0.0)
    union = area_o + area_t - inter
    iou = inter * pl.reciprocal(union, approx=True)           # EUP

    # enclosing box for generalized IoU
    ex0 = jnp.minimum(ox0, tx0)
    ey0 = jnp.minimum(oy0, ty0)
    ex1 = jnp.maximum(ox1, tx1)
    ey1 = jnp.maximum(oy1, ty1)
    enc = jnp.maximum(ex1 - ex0, 0.0) * jnp.maximum(ey1 - ey0, 0.0)
    giou = iou - (enc - union) * pl.reciprocal(enc, approx=True)   # [TN, Tp]

    # pairwise L1 distance (torch.cdist p=1) on cxcywh boxes
    l1 = (jnp.abs(ocx - tcx) + jnp.abs(ocy - tcy)
          + jnp.abs(ow - tw) + jnp.abs(oh - th))               # [TN, Tp]

    # NOTE: this module (per the given spec) adds +bbox_weight*GIoU, unlike
    # stock DETR which uses -giou; degenerate zero-area boxes divide by zero
    # exactly as the torch reference would.
    cost_ref[...] = class_term + bbox_weight * giou + l1_weight * l1


def _pick_tile_n(n, c, t_pad):
    """Largest TILE_N (multiple of 8, <=1024) whose double-buffered tiles plus
    the resident per-image target operands fit ~10 MiB (safe for the 16 MiB
    default scoped VMEM on v5e; comfortably under v6e/v7x defaults)."""
    budget = 10 * 1024 * 1024
    resident = 2 * 4 * (c + 4) * t_pad                 # onehot + tgt boxes (x2 bufs)
    avail = max(budget - resident, 1 << 20)
    per_row = 4 * (2 * (c + 4 + t_pad) + 8 * t_pad)     # 2x I/O tiles + live [.,Tp] temps
    tile = max(8, min(avail // per_row, 1024))
    tile = (tile // 8) * 8
    return int(min(tile, _round_up(n, 8)))


def _build_target_blocks(targets, num_classes):
    """Per-image one-hot labels [B,C,T_pad] and transposed boxes [B,4,T_pad],
    with T padded to a multiple of 128 (lane-dense output).  Padded columns
    get a unit dummy box so the GIoU math stays finite; they are sliced off
    before the assignment."""
    n_ts = [int(np.asarray(v['labels']).shape[0]) for v in targets]
    B = len(targets)
    t_max = max(max(n_ts) if n_ts else 1, 1)
    t_pad = _round_up(t_max, 128)

    onehot = np.zeros((B, num_classes, t_pad), np.float32)
    tboxes = np.zeros((B, 4, t_pad), np.float32)
    tboxes[:, 0, :] = 0.5
    tboxes[:, 1, :] = 0.5
    tboxes[:, 2, :] = 1.0
    tboxes[:, 3, :] = 1.0
    for b, v in enumerate(targets):
        nt = n_ts[b]
        if nt:
            labels = np.asarray(v['labels']).astype(np.int32)
            boxes = np.asarray(v['boxes'], np.float32)
            onehot[b, labels, np.arange(nt)] = 1.0
            tboxes[b, :, :nt] = boxes.T
    return jnp.asarray(onehot), jnp.asarray(tboxes), n_ts, t_pad


def _compute_cost_blocks(pred_logits, pred_boxes, onehot, tboxes,
                         class_weight, bbox_weight, l1_weight):
    """Block-diagonal cost: returns [B, N, T_pad]; image b's solver block is
    cost[b, :, :n_t_b]."""
    B, N, C = pred_logits.shape
    t_pad = onehot.shape[-1]
    tile_n = _pick_tile_n(N, C, t_pad)
    n_pad = _round_up(N, tile_n)

    logits = jnp.asarray(pred_logits, jnp.float32)
    boxes = jnp.asarray(pred_boxes, jnp.float32)
    if n_pad != N:
        logits = jnp.pad(logits, ((0, 0), (0, n_pad - N), (0, 0)))
        pad_box = jnp.broadcast_to(
            jnp.asarray([0.5, 0.5, 1.0, 1.0], jnp.float32), (B, n_pad - N, 4))
        boxes = jnp.concatenate([boxes, pad_box], axis=1)

    kernel = functools.partial(_cost_kernel,
                               class_weight=float(class_weight),
                               bbox_weight=float(bbox_weight),
                               l1_weight=float(l1_weight))

    cost = pl.pallas_call(
        kernel,
        out_shape=jax.ShapeDtypeStruct((B, n_pad, t_pad), jnp.float32),
        grid=(B, n_pad // tile_n),
        in_specs=[
            pl.BlockSpec((None, tile_n, C), lambda b, n: (b, n, 0)),
            pl.BlockSpec((None, tile_n, 4), lambda b, n: (b, n, 0)),
            pl.BlockSpec((None, C, t_pad), lambda b, n: (b, 0, 0)),
            pl.BlockSpec((None, 4, t_pad), lambda b, n: (b, 0, 0)),
        ],
        out_specs=pl.BlockSpec((None, tile_n, t_pad), lambda b, n: (b, n, 0)),
        compiler_params=pltpu.CompilerParams(
            dimension_semantics=("parallel", "parallel")),
    )(logits, boxes, onehot, tboxes)
    return cost[:, :N, :]


class HungarianMatcher:
    def __init__(self, class_weight: float = 1, bbox_weight: float = 1,
                 l1_weight: float = 1):
        self.class_weight = class_weight
        self.bbox_weight = bbox_weight
        self.l1_weight = l1_weight

    def forward(self, outputs, targets):
        pred_logits = outputs['pred_logits']
        pred_boxes = outputs['pred_boxes']
        B, N, C = pred_logits.shape

        onehot, tboxes, n_ts, _ = _build_target_blocks(targets, C)
        cost = _compute_cost_blocks(pred_logits, pred_boxes, onehot, tboxes,
                                    self.class_weight, self.bbox_weight,
                                    self.l1_weight)
        cost_np = np.asarray(jax.block_until_ready(cost))   # [B, N, T_pad]

        # TODO(synk): Hungarian linear_sum_assignment is a sequential,
        # data-dependent algorithm with no clean Pallas equivalent; it runs on
        # the host (scipy) over the Pallas-computed per-image cost blocks.
        indices = []
        for b, nt in enumerate(n_ts):
            c = cost_np[b, :, :nt]
            if _HAVE_SCIPY and nt > 0:
                i, j = linear_sum_assignment(c)
            else:
                k = min(N, nt)
                i, j = np.arange(k), np.arange(k)
            indices.append((np.asarray(i, dtype=np.int64),
                            np.asarray(j, dtype=np.int64)))
        return indices

    __call__ = forward


def _reference_cost(pred_logits, pred_boxes, tgt_ids, tgt_bbox, cw, bw, lw):
    """Pure-numpy reference of the full [B, N, T_total] cost matrix."""
    pred_logits = np.asarray(pred_logits, np.float32)
    pred_boxes = np.asarray(pred_boxes, np.float32)
    tgt_ids = np.asarray(tgt_ids)
    tgt_bbox = np.asarray(tgt_bbox, np.float32)
    B, N, C = pred_logits.shape
    logits = pred_logits.reshape(B * N, C)
    e = np.exp(logits - logits.max(-1, keepdims=True))
    prob = e / e.sum(-1, keepdims=True)
    class_cost = -prob[:, tgt_ids]

    def to_xyxy(b):
        cx, cy, w, h = b[:, 0], b[:, 1], b[:, 2], b[:, 3]
        return np.stack([cx - 0.5 * w, cy - 0.5 * h,
                         cx + 0.5 * w, cy + 0.5 * h], -1)

    ob = pred_boxes.reshape(B * N, 4)
    o, t = to_xyxy(ob), to_xyxy(tgt_bbox)
    area_o = (o[:, 2] - o[:, 0]) * (o[:, 3] - o[:, 1])
    area_t = (t[:, 2] - t[:, 0]) * (t[:, 3] - t[:, 1])
    lt = np.maximum(o[:, None, :2], t[None, :, :2])
    rb = np.minimum(o[:, None, 2:], t[None, :, 2:])
    wh = np.clip(rb - lt, 0, None)
    inter = wh[..., 0] * wh[..., 1]
    union = area_o[:, None] + area_t[None, :] - inter
    iou = inter / union
    elt = np.minimum(o[:, None, :2], t[None, :, :2])
    erb = np.maximum(o[:, None, 2:], t[None, :, 2:])
    ewh = np.clip(erb - elt, 0, None)
    enc = ewh[..., 0] * ewh[..., 1]
    giou = iou - (enc - union) / enc
    l1 = np.abs(ob[:, None, :] - tgt_bbox[None, :, :]).sum(-1)
    return (cw * class_cost + bw * giou + lw * l1).reshape(B, N, -1)


if __name__ == "__main__":
    B, N, C = 2, 8, 16          # batch, queries, classes
    key = jax.random.PRNGKey(0)
    k1, k2, k3, k4, k5, k6 = jax.random.split(key, 6)

    pred_logits = jax.random.normal(k1, (B, N, C), dtype=jnp.float32)
    # cxcywh in (0,1) with positive width/height
    centers = jax.random.uniform(k2, (B, N, 2), minval=0.25, maxval=0.75)
    sizes = jax.random.uniform(k3, (B, N, 2), minval=0.1, maxval=0.3)
    pred_boxes = jnp.concatenate([centers, sizes], axis=-1)

    # targets: 3 objects for image 0, 3 for image 1
    n_t = [3, 3]
    targets = []
    tkeys = jax.random.split(k4, len(n_t) * 2)
    for i, nt in enumerate(n_t):
        labels = jax.random.randint(tkeys[2 * i], (nt,), 0, C)
        tc = jax.random.uniform(tkeys[2 * i + 1], (nt, 2), minval=0.25, maxval=0.75)
        ts = jax.random.uniform(jax.random.fold_in(k5, i), (nt, 2),
                                minval=0.1, maxval=0.3)
        targets.append({'labels': labels,
                        'boxes': jnp.concatenate([tc, ts], axis=-1)})

    matcher = HungarianMatcher(class_weight=1.0, bbox_weight=1.0, l1_weight=1.0)
    indices = matcher({'pred_logits': pred_logits,
                       'pred_boxes': pred_boxes}, targets)

    # correctness check of the Pallas per-image cost blocks vs numpy reference
    onehot, tboxes, n_ts, _ = _build_target_blocks(targets, C)
    cost = _compute_cost_blocks(pred_logits, pred_boxes, onehot, tboxes,
                                1.0, 1.0, 1.0)
    cost_np = np.asarray(jax.block_until_ready(cost))       # [B, N, T_pad]

    tgt_ids = np.concatenate([np.asarray(v['labels']) for v in targets])
    tgt_bbox = np.concatenate([np.asarray(v['boxes']) for v in targets])
    ref = _reference_cost(pred_logits, pred_boxes, tgt_ids, tgt_bbox,
                          1.0, 1.0, 1.0)
    # tolerance loosened for pl.reciprocal(approx=True) on the EUP
    off = 0
    for b, nt in enumerate(n_ts):
        np.testing.assert_allclose(cost_np[b, :, :nt], ref[b, :, off:off + nt],
                                   rtol=2e-2, atol=2e-2)
        off += nt

    assert len(indices) == B
    for (i_idx, j_idx), nt in zip(indices, n_ts):
        assert len(i_idx) == min(N, nt) and len(j_idx) == min(N, nt)

    print("KERNEL_OK")
</pallas_src>

<mosaic_0001>
module attributes {stable_mosaic.version = 11 : i64} {
  func.func @_cost_kernel(%arg0: i32, %arg1: i32, %arg2: memref<1x8x16xf32, #tpu.memory_space<vmem>>, %arg3: memref<1x8x4xf32, #tpu.memory_space<vmem>>, %arg4: memref<1x16x128xf32, #tpu.memory_space<vmem>>, %arg5: memref<1x4x128xf32, #tpu.memory_space<vmem>>, %arg6: memref<1x8x128xf32, #tpu.memory_space<vmem>>) attributes {dimension_semantics = [#tpu.dimension_semantics<parallel>, #tpu.dimension_semantics<parallel>], iteration_bounds = array<i64: 2, 1>, scalar_prefetch = 0 : i64, scratch_operands = 0 : i64, tpu.core_type = #tpu.core_type<tc>, window_params = [{transform_indices = @transform_0, window_bounds = array<i64: 1, 8, 16>}, {transform_indices = @transform_1, window_bounds = array<i64: 1, 8, 4>}, {transform_indices = @transform_2, window_bounds = array<i64: 1, 16, 128>}, {transform_indices = @transform_3, window_bounds = array<i64: 1, 4, 128>}, {transform_indices = @transform_4, window_bounds = array<i64: 1, 8, 128>}]} {
    %c0 = arith.constant 0 : index
    %c0_0 = arith.constant 0 : index
    %c0_1 = arith.constant 0 : index
    %0 = vector.load %arg2[%c0, %c0_0, %c0_1] : memref<1x8x16xf32, #tpu.memory_space<vmem>>, vector<1x8x16xf32>
    %1 = vector.shape_cast %0 : vector<1x8x16xf32> to vector<8x16xf32>
    %cst = arith.constant dense<0xFF800000> : vector<8xf32>
    %2 = vector.multi_reduction <maximumf>, %1, %cst [1] : vector<8x16xf32> to vector<8xf32>
    %3 = vector.shape_cast %2 : vector<8xf32> to vector<8x1xf32>
    %4 = vector.broadcast %3 : vector<8x1xf32> to vector<8x16xf32>
    %5 = arith.subf %1, %4 : vector<8x16xf32>
    %6 = math.exp %5 : vector<8x16xf32>
    %cst_2 = arith.constant dense<0.000000e+00> : vector<8xf32>
    %7 = vector.multi_reduction <add>, %6, %cst_2 [1] : vector<8x16xf32> to vector<8xf32>
    %8 = vector.shape_cast %7 : vector<8xf32> to vector<8x1xf32>
    %9 = tpu.reciprocal %8 {approx = true} : vector<8x1xf32> -> vector<8x1xf32>
    %c0_3 = arith.constant 0 : index
    %c0_4 = arith.constant 0 : index
    %c0_5 = arith.constant 0 : index
    %10 = vector.load %arg4[%c0_3, %c0_4, %c0_5] : memref<1x16x128xf32, #tpu.memory_space<vmem>>, vector<1x16x128xf32>
    %11 = vector.shape_cast %10 : vector<1x16x128xf32> to vector<16x128xf32>
    %cst_6 = arith.constant dense<0.000000e+00> : vector<8x128xf32>
    %12 = tpu.matmul %6, %11, %cst_6 {dimension_numbers = #tpu.dot_dimension_numbers<[1], [0], [0], [1], [0, 0, 1, 1], [], []>} : vector<8x16xf32>, vector<16x128xf32>, vector<8x128xf32> -> vector<8x128xf32>
    %cst_7 = arith.constant -1.000000e+00 : f32
    %13 = vector.broadcast %cst_7 : f32 to vector<8x128xf32>
    %14 = arith.mulf %13, %12 : vector<8x128xf32>
    %15 = vector.broadcast %9 : vector<8x1xf32> to vector<8x128xf32>
    %16 = arith.mulf %14, %15 : vector<8x128xf32>
    %c0_8 = arith.constant 0 : index
    %c0_9 = arith.constant 0 : index
    %c0_10 = arith.constant 0 : index
    %17 = vector.load %arg3[%c0_8, %c0_9, %c0_10] : memref<1x8x4xf32, #tpu.memory_space<vmem>>, vector<1x8x4xf32>
    %18 = vector.shape_cast %17 : vector<1x8x4xf32> to vector<8x4xf32>
    %c0_11 = arith.constant 0 : index
    %c0_12 = arith.constant 0 : index
    %c0_13 = arith.constant 0 : index
    %19 = vector.load %arg5[%c0_11, %c0_12, %c0_13] : memref<1x4x128xf32, #tpu.memory_space<vmem>>, vector<1x4x128xf32>
    %20 = vector.shape_cast %19 : vector<1x4x128xf32> to vector<4x128xf32>
    %21 = vector.extract_strided_slice %18 {offsets = [0, 0], sizes = [8, 1], strides = [1, 1]} : vector<8x4xf32> to vector<8x1xf32>
    %22 = vector.extract_strided_slice %18 {offsets = [0, 1], sizes = [8, 1], strides = [1, 1]} : vector<8x4xf32> to vector<8x1xf32>
    %23 = vector.extract_strided_slice %18 {offsets = [0, 2], sizes = [8, 1], strides = [1, 1]} : vector<8x4xf32> to vector<8x1xf32>
    %24 = vector.extract_strided_slice %18 {offsets = [0, 3], sizes = [8, 1], strides = [1, 1]} : vector<8x4xf32> to vector<8x1xf32>
    %cst_14 = arith.constant 5.000000e-01 : f32
    %25 = vector.broadcast %cst_14 : f32 to vector<8x1xf32>
    %26 = arith.mulf %25, %23 : vector<8x1xf32>
    %27 = arith.subf %21, %26 : vector<8x1xf32>
    %cst_15 = arith.constant 5.000000e-01 : f32
    %28 = vector.broadcast %cst_15 : f32 to vector<8x1xf32>
    %29 = arith.mulf %28, %24 : vector<8x1xf32>
    %30 = arith.subf %22, %29 : vector<8x1xf32>
    %cst_16 = arith.constant 5.000000e-01 : f32
    %31 = vector.broadcast %cst_16 : f32 to vector<8x1xf32>
    %32 = arith.mulf %31, %23 : vector<8x1xf32>
    %33 = arith.addf %21, %32 : vector<8x1xf32>
    %cst_17 = arith.constant 5.000000e-01 : f32
    %34 = vector.broadcast %cst_17 : f32 to vector<8x1xf32>
    %35 = arith.mulf %34, %24 : vector<8x1xf32>
    %36 = arith.addf %22, %35 : vector<8x1xf32>
    %37 = vector.extract_strided_slice %20 {offsets = [0, 0], sizes = [1, 128], strides = [1, 1]} : vector<4x128xf32> to vector<1x128xf32>
    %38 = vector.extract_strided_slice %20 {offsets = [1, 0], sizes = [1, 128], strides = [1, 1]} : vector<4x128xf32> to vector<1x128xf32>
    %39 = vector.extract_strided_slice %20 {offsets = [2, 0], sizes = [1, 128], strides = [1, 1]} : vector<4x128xf32> to vector<1x128xf32>
    %40 = vector.extract_strided_slice %20 {offsets = [3, 0], sizes = [1, 128], strides = [1, 1]} : vector<4x128xf32> to vector<1x128xf32>
    %cst_18 = arith.constant 5.000000e-01 : f32
    %41 = vector.broadcast %cst_18 : f32 to vector<1x128xf32>
    %42 = arith.mulf %41, %39 : vector<1x128xf32>
    %43 = arith.subf %37, %42 : vector<1x128xf32>
    %cst_19 = arith.constant 5.000000e-01 : f32
    %44 = vector.broadcast %cst_19 : f32 to vector<1x128xf32>
    %45 = arith.mulf %44, %40 : vector<1x128xf32>
    %46 = arith.subf %38, %45 : vector<1x128xf32>
    %cst_20 = arith.constant 5.000000e-01 : f32
    %47 = vector.broadcast %cst_20 : f32 to vector<1x128xf32>
    %48 = arith.mulf %47, %39 : vector<1x128xf32>
    %49 = arith.addf %37, %48 : vector<1x128xf32>
    %cst_21 = arith.constant 5.000000e-01 : f32
    %50 = vector.broadcast %cst_21 : f32 to vector<1x128xf32>
    %51 = arith.mulf %50, %40 : vector<1x128xf32>
    %52 = arith.addf %38, %51 : vector<1x128xf32>
    %53 = arith.subf %33, %27 : vector<8x1xf32>
    %54 = arith.subf %36, %30 : vector<8x1xf32>
    %55 = arith.mulf %53, %54 : vector<8x1xf32>
    %56 = arith.subf %49, %43 : vector<1x128xf32>
    %57 = arith.subf %52, %46 : vector<1x128xf32>
    %58 = arith.mulf %56, %57 : vector<1x128xf32>
    %59 = vector.broadcast %27 : vector<8x1xf32> to vector<8x128xf32>
    %60 = vector.broadcast %43 : vector<1x128xf32> to vector<8x128xf32>
    %61 = arith.maximumf %59, %60 : vector<8x128xf32>
    %62 = vector.broadcast %30 : vector<8x1xf32> to vector<8x128xf32>
    %63 = vector.broadcast %46 : vector<1x128xf32> to vector<8x128xf32>
    %64 = arith.maximumf %62, %63 : vector<8x128xf32>
    %65 = vector.broadcast %33 : vector<8x1xf32> to vector<8x128xf32>
    %66 = vector.broadcast %49 : vector<1x128xf32> to vector<8x128xf32>
    %67 = arith.minimumf %65, %66 : vector<8x128xf32>
    %68 = vector.broadcast %36 : vector<8x1xf32> to vector<8x128xf32>
    %69 = vector.broadcast %52 : vector<1x128xf32> to vector<8x128xf32>
    %70 = arith.minimumf %68, %69 : vector<8x128xf32>
    %71 = arith.subf %67, %61 : vector<8x128xf32>
    %cst_22 = arith.constant 0.000000e+00 : f32
    %72 = vector.broadcast %cst_22 : f32 to vector<8x128xf32>
    %73 = arith.maximumf %71, %72 : vector<8x128xf32>
    %74 = arith.subf %70, %64 : vector<8x128xf32>
    %cst_23 = arith.constant 0.000000e+00 : f32
    %75 = vector.broadcast %cst_23 : f32 to vector<8x128xf32>
    %76 = arith.maximumf %74, %75 : vector<8x128xf32>
    %77 = arith.mulf %73, %76 : vector<8x128xf32>
    %78 = vector.broadcast %55 : vector<8x1xf32> to vector<8x128xf32>
    %79 = vector.broadcast %58 : vector<1x128xf32> to vector<8x128xf32>
    %80 = arith.addf %78, %79 : vector<8x128xf32>
    %81 = arith.subf %80, %77 : vector<8x128xf32>
    %82 = tpu.reciprocal %81 {approx = true} : vector<8x128xf32> -> vector<8x128xf32>
    %83 = arith.mulf %77, %82 : vector<8x128xf32>
    %84 = vector.broadcast %27 : vector<8x1xf32> to vector<8x128xf32>
    %85 = vector.broadcast %43 : vector<1x128xf32> to vector<8x128xf32>
    %86 = arith.minimumf %84, %85 : vector<8x128xf32>
    %87 = vector.broadcast %30 : vector<8x1xf32> to vector<8x128xf32>
    %88 = vector.broadcast %46 : vector<1x128xf32> to vector<8x128xf32>
    %89 = arith.minimumf %87, %88 : vector<8x128xf32>
    %90 = vector.broadcast %33 : vector<8x1xf32> to vector<8x128xf32>
    %91 = vector.broadcast %49 : vector<1x128xf32> to vector<8x128xf32>
    %92 = arith.maximumf %90, %91 : vector<8x128xf32>
    %93 = vector.broadcast %36 : vector<8x1xf32> to vector<8x128xf32>
    %94 = vector.broadcast %52 : vector<1x128xf32> to vector<8x128xf32>
    %95 = arith.maximumf %93, %94 : vector<8x128xf32>
    %96 = arith.subf %92, %86 : vector<8x128xf32>
    %cst_24 = arith.constant 0.000000e+00 : f32
    %97 = vector.broadcast %cst_24 : f32 to vector<8x128xf32>
    %98 = arith.maximumf %96, %97 : vector<8x128xf32>
    %99 = arith.subf %95, %89 : vector<8x128xf32>
    %cst_25 = arith.constant 0.000000e+00 : f32
    %100 = vector.broadcast %cst_25 : f32 to vector<8x128xf32>
    %101 = arith.maximumf %99, %100 : vector<8x128xf32>
    %102 = arith.mulf %98, %101 : vector<8x128xf32>
    %103 = arith.subf %102, %81 : vector<8x128xf32>
    %104 = tpu.reciprocal %102 {approx = true} : vector<8x128xf32> -> vector<8x128xf32>
    %105 = arith.mulf %103, %104 : vector<8x128xf32>
    %106 = arith.subf %83, %105 : vector<8x128xf32>
    %107 = vector.broadcast %21 : vector<8x1xf32> to vector<8x128xf32>
    %108 = vector.broadcast %37 : vector<1x128xf32> to vector<8x128xf32>
    %109 = arith.subf %107, %108 : vector<8x128xf32>
    %110 = math.absf %109 : vector<8x128xf32>
    %111 = vector.broadcast %22 : vector<8x1xf32> to vector<8x128xf32>
    %112 = vector.broadcast %38 : vector<1x128xf32> to vector<8x128xf32>
    %113 = arith.subf %111, %112 : vector<8x128xf32>
    %114 = math.absf %113 : vector<8x128xf32>
    %115 = arith.addf %110, %114 : vector<8x128xf32>
    %116 = vector.broadcast %23 : vector<8x1xf32> to vector<8x128xf32>
    %117 = vector.broadcast %39 : vector<1x128xf32> to vector<8x128xf32>
    %118 = arith.subf %116, %117 : vector<8x128xf32>
    %119 = math.absf %118 : vector<8x128xf32>
    %120 = arith.addf %115, %119 : vector<8x128xf32>
    %121 = vector.broadcast %24 : vector<8x1xf32> to vector<8x128xf32>
    %122 = vector.broadcast %40 : vector<1x128xf32> to vector<8x128xf32>
    %123 = arith.subf %121, %122 : vector<8x128xf32>
    %124 = math.absf %123 : vector<8x128xf32>
    %125 = arith.addf %120, %124 : vector<8x128xf32>
    %cst_26 = arith.constant 1.000000e+00 : f32
    %126 = vector.broadcast %cst_26 : f32 to vector<8x128xf32>
    %127 = arith.mulf %126, %106 : vector<8x128xf32>
    %128 = arith.addf %16, %127 : vector<8x128xf32>
    %cst_27 = arith.constant 1.000000e+00 : f32
    %129 = vector.broadcast %cst_27 : f32 to vector<8x128xf32>
    %130 = arith.mulf %129, %125 : vector<8x128xf32>
    %131 = arith.addf %128, %130 : vector<8x128xf32>
    %c0_28 = arith.constant 0 : index
    %c0_29 = arith.constant 0 : index
    %c0_30 = arith.constant 0 : index
    %132 = vector.load %arg6[%c0_28, %c0_29, %c0_30] : memref<1x8x128xf32, #tpu.memory_space<vmem>>, vector<1x8x128xf32>
    %133 = vector.shape_cast %132 : vector<1x8x128xf32> to vector<8x128xf32>
    %134 = vector.shape_cast %131 : vector<8x128xf32> to vector<1x8x128xf32>
    tpu.vector_store %arg6[%c0_28, %c0_29, %c0_30], %134 {strides = array<i32>} : memref<1x8x128xf32, #tpu.memory_space<vmem>>, vector<1x8x128xf32>,
    return
  }
  func.func @transform_0(%arg0: i32, %arg1: i32) -> (i32, i32, i32) {
    %c0_i32 = arith.constant 0 : i32
    %c0_i32_0 = arith.constant 0 : i32
    return %arg0, %arg1, %c0_i32 : i32, i32, i32
  }
  func.func @transform_1(%arg0: i32, %arg1: i32) -> (i32, i32, i32) {
    %c0_i32 = arith.constant 0 : i32
    %c0_i32_0 = arith.constant 0 : i32
    return %arg0, %arg1, %c0_i32 : i32, i32, i32
  }
  func.func @transform_2(%arg0: i32, %arg1: i32) -> (i32, i32, i32) {
    %c0_i32 = arith.constant 0 : i32
    %c0_i32_0 = arith.constant 0 : i32
    %c0_i32_1 = arith.constant 0 : i32
    return %arg0, %c0_i32, %c0_i32_0 : i32, i32, i32
  }
  func.func @transform_3(%arg0: i32, %arg1: i32) -> (i32, i32, i32) {
    %c0_i32 = arith.constant 0 : i32
    %c0_i32_0 = arith.constant 0 : i32
    %c0_i32_1 = arith.constant 0 : i32
    return %arg0, %c0_i32, %c0_i32_0 : i32, i32, i32
  }
  func.func @transform_4(%arg0: i32, %arg1: i32) -> (i32, i32, i32) {
    %c0_i32 = arith.constant 0 : i32
    %c0_i32_0 = arith.constant 0 : i32
    return %arg0, %arg1, %c0_i32 : i32, i32, i32
  }
}

</mosaic_0001>

<llo_original>
// kernel: tpu_custom_call.1
$region0: #{tpu_custom_call.1}
  #allocation0 [shape = 'u32[]', space=smem, size = 0x4, offset = 0x4, fixed_abs, tag = 'smem constant byte address 0x4 - core index']
  #allocation1 [shape = 'u32[144,128]{1,0:T(1,128)}', space=vmem, size = 0x12000, scoped, tag = 'internal scratch']
  %s0 = inlined_call_operand.vmem [shape: f32[2,8,16], index: 0, kind: input, shape index: {}]
  %s1 = inlined_call_operand.vmem [shape: f32[2,8,4], index: 1, kind: input, shape index: {}]
  %s2 = inlined_call_operand.hbm [shape: f32[2,16,128], index: 2, kind: input, shape index: {}]
  %s3 = inlined_call_operand.vmem [shape: f32[2,4,128], index: 3, kind: input, shape index: {}]
  %s4 = inlined_call_operand.hbm [shape: f32[2,8,128], index: 4, kind: output, shape index: {}]
  %s5 = sld [smem:[#allocation0]]
  $region53: #{tpu_custom_call.1} parent=0
    _
  %s7 = ssub.s32 1, %s5
  %s8 = scalar_select 0, %s7, %s5
  $region1: #{tpu_custom_call.1} parent=0
    #allocation2 [shape = 'u8[16384]{0}', space=vmem, size = 0x4000, scoped, tag = 'input window, operand 2']
    #allocation3 [shape = 's32[2]{0}', space=sflag, size = 0x8, scoped, tag = 'scoped memory for tpu_custom_call.1']
    #allocation4 [shape = 's32[2]{0}', space=sflag, size = 0x8, scoped, tag = 'scoped memory for tpu_custom_call.1']
    #allocation5 [shape = 'u8[8192]{0}', space=vmem, size = 0x2000, scoped, tag = 'output window, operand 0']
    %9 = vsyncpa [#allocation3], 0
    %s10 = scalar_lea.sflag [#allocation3], 1
    %11 = vsyncpa %s10, 0
    %12 = vsyncpa [#allocation4], 0
    %s13 = scalar_lea.sflag [#allocation4], 1
    %14 = vsyncpa %s13, 0
    loop: start=0, step=1, limit=4
    $region2: #{tpu_custom_call.1} parent=1 // loop_pre_header
      _
    $region3: #{tpu_custom_call.1} parent=1 // loop_header
      %s16 = sphi 0, %s20
      %p17 = scmp.ge.s32.totalorder %s16, 4
      %s23 = sphi 0, %s35
      %s24 = sphi 0, %s31
      %s25 = sphi 0, %s23
      %s26 = sphi 0, %s24
      %s27 = sphi 0, %s25
      %s28 = sphi 0, %s26
      %s40 = sphi 0, %s42
      %s43 = sphi 0, %s40
      %s44 = sphi 0, %s43
      %s60 = sphi 0, %s44
      %s68 = sphi 0, %s70
      %s71 = sphi 0, %s68
      %s72 = sphi 0, %s71
      %s88 = sphi 0, %s72
      %s94 = sphi 0, %s96
      %s97 = sphi 0, %s94
      %s98 = sphi 0, %s97
      %s114 = sphi 0, %s98
      %s120 = sphi 0, %s122
      %s123 = sphi 0, %s120
      %s124 = sphi 0, %s123
      %s140 = sphi 0, %s124
      %s148 = sphi 0, %s150
      %s151 = sphi 0, %s148
      %s152 = sphi 0, %s151
      %s168 = sphi 0, %s152
    $region4: #{tpu_custom_call.1} parent=1 // loop_header_branch
      %19 = sbr.rel (%p17) target = $region8
    $region5: #{tpu_custom_call.1} parent=1 // loop_body
      %s21 = ssub.s32 %s16, 1
      %s22 = ssub.s32 %s16, 2
      %s29 = sadd.s32 1, %s24
      %p30 = scmp.ge.s32.totalorder %s29, 1
      %s31 = scalar_select %p30, 0, %s29
      %s32 = sadd.s32 1, %s23
      %s33 = scalar_select %p30, %s32, %s23
      %p34 = scmp.ge.s32.totalorder %s33, 2
      %s35 = scalar_select %p34, 0, %s33
      %s36 = ssub.s32 %s23, %s35
      %s37 = ssub.s32 %s24, %s31
      %s38 = sor.u32 %s36, %s37
      %p39 = scmp.eq.s32.totalorder %s38, 0
      %s41 = sadd.s32 %s40, 1
      %s42 = scalar_select %p39, %s40, %s41
      %p45 = pneg %p39
      %p46 = scmp.eq.s32.totalorder %s16, 1
      %p47 = por %p45, %p46
      %p48 = scmp.ne.s32.totalorder %s40, %s43
      %p49 = scmp.eq.s32.totalorder %s16, 0
      %p50 = por %p48, %p49
      %p51 = scmp.ne.s32.totalorder %s40, %s43
      %p52 = scmp.eq.s32.totalorder %s21, 1
      %p53 = por %p51, %p52
      %p54 = scmp.ne.s32.totalorder %s43, %s44
      %p55 = scmp.eq.s32.totalorder %s21, 0
      %p56 = por %p54, %p55
      %p57 = scmp.ne.s32.totalorder %s43, %s44
      %p58 = scmp.eq.s32.totalorder %s22, 1
      %p59 = por %p57, %p58
      %p61 = scmp.ne.s32.totalorder %s44, %s60
      %p62 = scmp.eq.s32.totalorder %s22, 0
      %p63 = por %p61, %p62
      %s64 = ssub.s32 %s23, %s35
      %s65 = ssub.s32 %s24, %s31
      %s66 = sor.u32 %s64, %s65
      %p67 = scmp.eq.s32.totalorder %s66, 0
      %s69 = sadd.s32 %s68, 1
      %s70 = scalar_select %p67, %s68, %s69
      %p73 = pneg %p67
      %p74 = scmp.eq.s32.totalorder %s16, 1
      %p75 = por %p73, %p74
      %p76 = scmp.ne.s32.totalorder %s68, %s71
      %p77 = scmp.eq.s32.totalorder %s16, 0
      %p78 = por %p76, %p77
      %p79 = scmp.ne.s32.totalorder %s68, %s71
      %p80 = scmp.eq.s32.totalorder %s21, 1
      %p81 = por %p79, %p80
      %p82 = scmp.ne.s32.totalorder %s71, %s72
      %p83 = scmp.eq.s32.totalorder %s21, 0
      %p84 = por %p82, %p83
      %p85 = scmp.ne.s32.totalorder %s71, %s72
      %p86 = scmp.eq.s32.totalorder %s22, 1
      %p87 = por %p85, %p86
      %p89 = scmp.ne.s32.totalorder %s72, %s88
      %p90 = scmp.eq.s32.totalorder %s22, 0
      %p91 = por %p89, %p90
      %s92 = ssub.s32 %s23, %s35
      %p93 = scmp.eq.s32.totalorder %s92, 0
      %s95 = sadd.s32 %s94, 1
      %s96 = scalar_select %p93, %s94, %s95
      %p99 = pneg %p93
      %p100 = scmp.eq.s32.totalorder %s16, 1
      %p101 = por %p99, %p100
      %p102 = scmp.ne.s32.totalorder %s94, %s97
      %p103 = scmp.eq.s32.totalorder %s16, 0
      %p104 = por %p102, %p103
      %p105 = scmp.ne.s32.totalorder %s94, %s97
      %p106 = scmp.eq.s32.totalorder %s21, 1
      %p107 = por %p105, %p106
      %p108 = scmp.ne.s32.totalorder %s97, %s98
      %p109 = scmp.eq.s32.totalorder %s21, 0
      %p110 = por %p108, %p109
      %p111 = scmp.ne.s32.totalorder %s97, %s98
      %p112 = scmp.eq.s32.totalorder %s22, 1
      %p113 = por %p111, %p112
      %p115 = scmp.ne.s32.totalorder %s98, %s114
      %p116 = scmp.eq.s32.totalorder %s22, 0
      %p117 = por %p115, %p116
      %s118 = ssub.s32 %s23, %s35
      %p119 = scmp.eq.s32.totalorder %s118, 0
      %s121 = sadd.s32 %s120, 1
      %s122 = scalar_select %p119, %s120, %s121
      %p125 = pneg %p119
      %p126 = scmp.eq.s32.totalorder %s16, 1
      %p127 = por %p125, %p126
      %p128 = scmp.ne.s32.totalorder %s120, %s123
      %p129 = scmp.eq.s32.totalorder %s16, 0
      %p130 = por %p128, %p129
      %p131 = scmp.ne.s32.totalorder %s120, %s123
      %p132 = scmp.eq.s32.totalorder %s21, 1
      %p133 = por %p131, %p132
      %p134 = scmp.ne.s32.totalorder %s123, %s124
      %p135 = scmp.eq.s32.totalorder %s21, 0
      %p136 = por %p134, %p135
      %p137 = scmp.ne.s32.totalorder %s123, %s124
      %p138 = scmp.eq.s32.totalorder %s22, 1
      %p139 = por %p137, %p138
      %p141 = scmp.ne.s32.totalorder %s124, %s140
      %p142 = scmp.eq.s32.totalorder %s22, 0
      %p143 = por %p141, %p142
      %s144 = ssub.s32 %s23, %s35
      %s145 = ssub.s32 %s24, %s31
      %s146 = sor.u32 %s144, %s145
      %p147 = scmp.eq.s32.totalorder %s146, 0
      %s149 = sadd.s32 %s148, 1
      %s150 = scalar_select %p147, %s148, %s149
      %p153 = pneg %p147
      %p154 = scmp.eq.s32.totalorder %s16, 1
      %p155 = por %p153, %p154
      %p156 = scmp.ne.s32.totalorder %s148, %s151
      %p157 = scmp.eq.s32.totalorder %s16, 0
      %p158 = por %p156, %p157
      %p159 = scmp.ne.s32.totalorder %s148, %s151
      %p160 = scmp.eq.s32.totalorder %s21, 1
      %p161 = por %p159, %p160
      %p162 = scmp.ne.s32.totalorder %s151, %s152
      %p163 = scmp.eq.s32.totalorder %s21, 0
      %p164 = por %p162, %p163
      %p165 = scmp.ne.s32.totalorder %s151, %s152
      %p166 = scmp.eq.s32.totalorder %s22, 1
      %p167 = por %p165, %p166
      %p169 = scmp.ne.s32.totalorder %s152, %s168
      %p170 = scmp.eq.s32.totalorder %s22, 0
      %p171 = por %p169, %p170
      %p172 = scmp.le.s32.totalorder 1, %s16
      %p173 = scmp.lt.s32.totalorder %s16, 3
      %p174 = pnand %p172, %p173
      %p175 = pneg %p174
      // Predicated region
      $region9: #{tpu_custom_call.1} parent=5 // pred_check
        _
      $region10: #{tpu_custom_call.1} parent=5 // pred_check_branch
        %177 = sbr.rel (%p174) target = $region12
      $region11: #{tpu_custom_call.1} parent=5 // pred_region
        %s178 = ssub.s32 %s16, 1
      $region12: #{tpu_custom_call.1} parent=5 // pred_fallthru
        _
      %p179 = scmp.lt.s32.totalorder %s16, 2
      // Predicated region
      $region13: #{tpu_custom_call.1} parent=5 // pred_check
        %p180 = pneg %p179
      $region14: #{tpu_custom_call.1} parent=5 // pred_check_branch
        %182 = sbr.rel (%p180) target = $region16
      $region15: #{tpu_custom_call.1} parent=5 // pred_region
        // Predicated region
        $region17: #{tpu_custom_call.1} parent=15 // pred_check
          %p183 = pneg %p50
        $region18: #{tpu_custom_call.1} parent=15 // pred_check_branch
          %185 = sbr.rel (%p183) target = $region20
        $region19: #{tpu_custom_call.1} parent=15 // pred_region
          %p186 = scmp.lt.s32.totalorder %s23, 1
          %s187 = scalar_select %p186, %s23, 1
          %p188 = scmp.lt.s32.totalorder %s24, 0
          %s189 = scalar_select %p188, %s24, 0
          %s190 = sadd.s32 %s189, %s187
          %s191 = smul.addr %s190, 8
          %s192 = scalar_lea.vmem %s0, %s191
        $region20: #{tpu_custom_call.1} parent=15 // pred_fallthru
          _
        // Predicated region
        $region21: #{tpu_custom_call.1} parent=15 // pred_check
          %p193 = pneg %p78
        $region22: #{tpu_custom_call.1} parent=15 // pred_check_branch
          %195 = sbr.rel (%p193) target = $region24
        $region23: #{tpu_custom_call.1} parent=15 // pred_region
          %p196 = scmp.lt.s32.totalorder %s23, 1
          %s197 = scalar_select %p196, %s23, 1
          %p198 = scmp.lt.s32.totalorder %s24, 0
          %s199 = scalar_select %p198, %s24, 0
          %s200 = sadd.s32 %s199, %s197
          %s201 = smul.addr %s200, 8
          %s202 = scalar_lea.vmem %s1, %s201
        $region24: #{tpu_custom_call.1} parent=15 // pred_fallthru
          _
        // Predicated region
        $region25: #{tpu_custom_call.1} parent=15 // pred_check
          %p203 = pneg %p104
        $region26: #{tpu_custom_call.1} parent=15 // pred_check_branch
          %205 = sbr.rel (%p203) target = $region28
        $region27: #{tpu_custom_call.1} parent=15 // pred_region
          %s206 = sand.u32 %s94, 1
          %s207 = scalar_lea.sflag [#allocation3], %s206
          %s208 = sand.u32 %s94, 1
          %s209 = smul.addr %s208, 16
          %s210 = scalar_lea.vmem [#allocation2], %s209
          %s212 = ssub.s32 256, 256
          %213 = vsyncadd %s207, %s212
          %s214 = smul.addr %s23, 2
          %s215 = smul.addr %s214, 128
          %s216 = scalar_lea.hbm %s2, %s215
          %s217 = sshll.u32 %s210, 4
          %s218 = int_to_ptr.vmem [resolvable:$true] %s217
          %223 = dma.hbm_to_vmem [thread:$0]  %s216, 256, %s218, %s207, 128, 128, 8
        $region28: #{tpu_custom_call.1} parent=15 // pred_fallthru
          _
        // Predicated region
        $region29: #{tpu_custom_call.1} parent=15 // pred_check
          %p224 = pneg %p130
        $region30: #{tpu_custom_call.1} parent=15 // pred_check_branch
          %226 = sbr.rel (%p224) target = $region32
        $region31: #{tpu_custom_call.1} parent=15 // pred_region
          %p227 = scmp.lt.s32.totalorder %s23, 1
          %s228 = scalar_select %p227, %s23, 1
          %s229 = smul.addr %s228, 4
          %s230 = scalar_lea.vmem %s3, %s229
        $region32: #{tpu_custom_call.1} parent=15 // pred_fallthru
          _
      $region16: #{tpu_custom_call.1} parent=5 // pred_fallthru
        _
      %p231 = scmp.le.s32.totalorder 1, %s16
      %p232 = scmp.lt.s32.totalorder %s16, 3
      %p233 = pnand %p231, %p232
      %p234 = pneg %p233
      // Predicated region
      $region33: #{tpu_custom_call.1} parent=5 // pred_check
        _
      $region34: #{tpu_custom_call.1} parent=5 // pred_check_branch
        %236 = sbr.rel (%p233) target = $region36
      $region35: #{tpu_custom_call.1} parent=5 // pred_region
        %s237 = ssub.s32 %s16, 1
        %s238 = sand.u32 %s97, 1
        %s239 = scalar_lea.sflag [#allocation3], %s238
        %s240 = sand.u32 %s97, 1
        %s241 = smul.addr %s240, 16
        %s242 = scalar_lea.vmem [#allocation2], %s241
        // Predicated region
        $region37: #{tpu_custom_call.1} parent=35 // pred_check
          %p243 = pneg %p110
        $region38: #{tpu_custom_call.1} parent=35 // pred_check_branch
          %245 = sbr.rel (%p243) target = $region40
        $region39: #{tpu_custom_call.1} parent=35 // pred_region
          %246 = dma.done %s239, 256
        $region40: #{tpu_custom_call.1} parent=35 // pred_fallthru
          _
        %p247 = scmp.lt.s32.totalorder %s25, 1
        %s248 = scalar_select %p247, %s25, 1
        %p249 = scmp.lt.s32.totalorder %s26, 0
        %s250 = scalar_select %p249, %s26, 0
        %s251 = sadd.s32 %s250, %s248
        %s252 = smul.addr %s251, 8
        %s253 = scalar_lea.vmem %s0, %s252
        %p254 = pneg %p56
        %p255 = pneg %p53
        %p256 = scmp.lt.s32.totalorder %s25, 1
        %s257 = scalar_select %p256, %s25, 1
        %p258 = scmp.lt.s32.totalorder %s26, 0
        %s259 = scalar_select %p258, %s26, 0
        %s260 = sadd.s32 %s259, %s257
        %s261 = smul.addr %s260, 8
        %s262 = scalar_lea.vmem %s1, %s261
        %p263 = pneg %p84
        %p264 = pneg %p81
        %s265 = sand.u32 %s97, 1
        %s266 = scalar_lea.sflag [#allocation3], %s265
        %s267 = sand.u32 %s97, 1
        %s268 = smul.addr %s267, 16
        %s269 = scalar_lea.vmem [#allocation2], %s268
        %p270 = pneg %p110
        %p271 = pneg %p107
        %p272 = scmp.lt.s32.totalorder %s25, 1
        %s273 = scalar_select %p272, %s25, 1
        %s274 = smul.addr %s273, 4
        %s275 = scalar_lea.vmem %s3, %s274
        %p276 = pneg %p136
        %p277 = pneg %p133
        %p278 = pneg %p164
        %p279 = pneg %p161
        %s280 = sand.u32 %s151, 1
        %s281 = scalar_lea.sflag [#allocation4], %s280
        %s282 = sand.u32 %s151, 1
        %s283 = smul.addr %s282, 8
        %s284 = scalar_lea.vmem [#allocation5], %s283
        %p285 = scmp.lt.s32.totalorder %s25, 1
        %s286 = scalar_select %p285, %s25, 1
        %p287 = scmp.lt.s32.totalorder %s26, 0
        %s288 = scalar_select %p287, %s26, 0
        %s289 = sadd.s32 %s288, %s286
        %s290 = smul.addr %s289, 8
        %s291 = scalar_lea.vmem %s0, %s290
        %p292 = scmp.lt.s32.totalorder %s25, 1
        %s293 = scalar_select %p292, %s25, 1
        %p294 = scmp.lt.s32.totalorder %s26, 0
        %s295 = scalar_select %p294, %s26, 0
        %s296 = sadd.s32 %s295, %s293
        %s297 = smul.addr %s296, 8
        %s298 = scalar_lea.vmem %s1, %s297
        %p299 = scmp.lt.s32.totalorder %s25, 1
        %s300 = scalar_select %p299, %s25, 1
        %s301 = smul.addr %s300, 4
        %s302 = scalar_lea.vmem %s3, %s301
        %v303 = vld [vmem:[%s291] sm:$0xff]
        %vm304 = vcmask 130048
        %v305 = vsel %vm304, %v303, -inf
        %306 = vmax.xlane.f32.xlu0 %v305
        %v307 = vpop.xlane.xlu0 %306
        %v308 = vsub.f32 %v303, %v307
        %v309 = vmul.f32 %v308, 1.442695
        %v310 = vpow.pop %v309
        %v311 = vsel %vm304, %v310, 0.0
        %312 = vadd.xlane.f32.xlu0 %v311
        %v313 = vpop.xlane.xlu0 %312
        %v314 = vrcp.pop %v313
        %v315 = vld [vmem:[%s242] sm:$0xff]
        %v316 = vld [vmem:[%s242 + $0x8] sm:$0xff]
        %v318 = vsel %vm304, %v310, 0
        %320 = vmatprep.subr.mxu0 0.0
        %321 = vmatpush1.msra.mxu0 0.0
        %322 = vmatprep.subr.mxu0 0.0
        %323 = vmatpush1.msra.mxu0 0.0
        %324 = vmatprep.subr.mxu0 0.0
        %325 = vmatpush1.msra.mxu0 0.0
        %326 = vmatprep.subr.mxu0 0.0
        %327 = vmatpush1.msra.mxu0 0.0
        %328 = vmatprep.subr.mxu0 0.0
        %329 = vmatpush1.msra.mxu0 0.0
        %330 = vmatprep.subr.mxu0 0.0
        %331 = vmatpush1.msra.mxu0 0.0
        %332 = vmatprep.subr.mxu0 0.0
        %333 = vmatpush1.msra.mxu0 0.0
        %334 = vmatprep.subr.mxu0 0.0
        %335 = vmatpush1.msra.mxu0 0.0
        %336 = vmatprep.subr.mxu0 0.0
        %337 = vmatpush1.msra.mxu0 0.0
        %338 = vmatprep.subr.mxu0 0.0
        %339 = vmatpush1.msra.mxu0 0.0
        %340 = vmatprep.subr.mxu0 0.0
        %341 = vmatpush1.msra.mxu0 0.0
        %342 = vmatprep.subr.mxu0 0.0
        %343 = vmatpush1.msra.mxu0 0.0
        %344 = vmatprep.subr.mxu0 0.0
        %345 = vmatpush1.msra.mxu0 0.0
        %346 = vmatprep.subr.mxu0 0.0
        %347 = vmatpush1.msra.mxu0 0.0
        %348 = vmatprep.subr.mxu0 0.0
        %349 = vmatpush1.msra.mxu0 %v316
        %350 = vmatprep.subr.mxu0 0.0
        %351 = vmatpush1.msra.mxu0 %v315
        %352 = vmatprep.subr.mxu0 0.0
        %353 = vmatpush2.msra.mxu0 0.0
        %354 = vmatprep.subr.mxu0 0.0
        %355 = vmatpush2.msra.mxu0 0.0
        %356 = vmatprep.subr.mxu0 0.0
        %357 = vmatpush2.msra.mxu0 0.0
        %358 = vmatprep.subr.mxu0 0.0
        %359 = vmatpush2.msra.mxu0 0.0
        %360 = vmatprep.subr.mxu0 0.0
        %361 = vmatpush2.msra.mxu0 0.0
        %362 = vmatprep.subr.mxu0 0.0
        %363 = vmatpush2.msra.mxu0 0.0
        %364 = vmatprep.subr.mxu0 0.0
        %365 = vmatpush2.msra.mxu0 0.0
        %366 = vmatprep.subr.mxu0 0.0
        %367 = vmatpush2.msra.mxu0 0.0
        %368 = vmatprep.subr.mxu0 0.0
        %369 = vmatpush2.msra.mxu0 0.0
        %370 = vmatprep.subr.mxu0 0.0
        %371 = vmatpush2.msra.mxu0 0.0
        %372 = vmatprep.subr.mxu0 0.0
        %373 = vmatpush2.msra.mxu0 0.0
        %374 = vmatprep.subr.mxu0 0.0
        %375 = vmatpush2.msra.mxu0 0.0
        %376 = vmatprep.subr.mxu0 0.0
        %377 = vmatpush2.msra.mxu0 0.0
        %378 = vmatprep.subr.mxu0 0.0
        %379 = vmatpush2.msra.mxu0 0.0
        %380 = vmatprep.subr.mxu0 0.0
        %381 = vmatpush2.msra.mxu0 0.0
        %382 = vmatprep.subr.mxu0 0.0
        %383 = vmatpush2.msra.mxu0 0.0
        %384 = vmatprep.mubr.f32.mxu0 0.0
        %385 = vmatmul.mubr.f32.gmra.mxu0 %v318
        %v386 = vpop.f32.mrf.mxu0
        %v387 = vadd.f32 0.0, %v386
        %v388 = vpop.f32.mrf.mxu0
        %389 = vdwg.mxu0
        %v390 = vmul.f32 %v387, -1.0
        %v391 = vmul.f32 %v390, %v314
        %v392 = vld [vmem:[%s298] sm:$0xff]
        %v393 = vld [vmem:[%s302] sm:$0xf]
        %v394 = vmul.f32 %v392, 0.5
        %396 = vrot.lane.b32.xlu0 %v394, 126
        %v397 = vpop.permute.xlu0 %396
        %v399 = vsub.f32 %v392, %v397
        %v400 = vadd.f32 %v392, %v397
        %v401 = vmul.f32 %v393, 0.5
        %v403 = vrot.slane %v401, 2
        %v405 = vsub.f32 %v393, %v403
        %v406 = vadd.f32 %v393, %v403
        %v407 = vsub.f32 %v400, %v399
        %409 = vrot.lane.b32.xlu0 %v407, 127
        %v410 = vpop.permute.xlu0 %409
        %v412 = vmul.f32 %v407, %v410
        %v413 = vsub.f32 %v406, %v405
        %v415 = vrot.slane %v413, 1
        %v417 = vmul.f32 %v413, %v415
        %419 = vset.pattern.permute.xlu0 0
        %420 = vperm.xlu0 %419, %v399
        %v421 = vpop.permute.xlu0 %420
        %v423 = vlaneseq
        %v424 = vshrl.u32 %v423, 7
        %v425 = vsub.s32 0, %v424
        %v426 = vrot.slane %v405, %v425
        %v427 = vmax.f32 %v421, %v426
        %428 = vset.pattern.permute.xlu0 1
        %429 = vperm.xlu0 %428, %v399
        %v430 = vpop.permute.xlu0 %429
        %v432 = vlaneseq
        %v433 = vshrl.u32 %v432, 7
        %v434 = vsub.s32 1, %v433
        %v435 = vrot.slane %v405, %v434
        %v436 = vmax.f32 %v430, %v435
        %438 = vset.pattern.permute.xlu0 0
        %439 = vperm.xlu0 %438, %v400
        %v440 = vpop.permute.xlu0 %439
        %v442 = vlaneseq
        %v443 = vshrl.u32 %v442, 7
        %v444 = vsub.s32 0, %v443
        %v445 = vrot.slane %v406, %v444
        %v446 = vmin.f32 %v440, %v445
        %447 = vset.pattern.permute.xlu0 1
        %448 = vperm.xlu0 %447, %v400
        %v449 = vpop.permute.xlu0 %448
        %v451 = vlaneseq
        %v452 = vshrl.u32 %v451, 7
        %v453 = vsub.s32 1, %v452
        %v454 = vrot.slane %v406, %v453
        %v455 = vmin.f32 %v449, %v454
        %v456 = vsub.f32 %v446, %v427
        %v457 = vmax.f32 %v456, 0.0
        %v458 = vsub.f32 %v455, %v436
        %v459 = vmax.f32 %v458, 0.0
        %v460 = vmul.f32 %v457, %v459
        %462 = vset.pattern.permute.xlu0 0
        %463 = vperm.xlu0 %462, %v412
        %v464 = vpop.permute.xlu0 %463
        %v466 = vlaneseq
        %v467 = vshrl.u32 %v466, 7
        %v468 = vsub.s32 0, %v467
        %v469 = vrot.slane %v417, %v468
        %v470 = vadd.f32 %v464, %v469
        %v471 = vsub.f32 %v470, %v460
        %v472 = vrcp.pop %v471
        %v473 = vmul.f32 %v460, %v472
        %v474 = vmin.f32 %v421, %v426
        %v475 = vmin.f32 %v430, %v435
        %v476 = vmax.f32 %v440, %v445
        %v477 = vmax.f32 %v449, %v454
        %v478 = vsub.f32 %v476, %v474
        %v479 = vmax.f32 %v478, 0.0
        %v480 = vsub.f32 %v477, %v475
        %v481 = vmax.f32 %v480, 0.0
        %v482 = vmul.f32 %v479, %v481
        %v483 = vsub.f32 %v482, %v471
        %v484 = vrcp.pop %v482
        %v485 = vmul.f32 %v483, %v484
        %v486 = vsub.f32 %v473, %v485
        %488 = vset.pattern.permute.xlu0 0
        %489 = vperm.xlu0 %488, %v392
        %v490 = vpop.permute.xlu0 %489
        %v492 = vlaneseq
        %v493 = vshrl.u32 %v492, 7
        %v494 = vsub.s32 0, %v493
        %v495 = vrot.slane %v393, %v494
        %v496 = vsub.f32 %v490, %v495
        %v497 = vand.u32 2147483647, %v496
        %498 = vset.pattern.permute.xlu0 1
        %499 = vperm.xlu0 %498, %v392
        %v500 = vpop.permute.xlu0 %499
        %v502 = vlaneseq
        %v503 = vshrl.u32 %v502, 7
        %v504 = vsub.s32 1, %v503
        %v505 = vrot.slane %v393, %v504
        %v506 = vsub.f32 %v500, %v505
        %v507 = vand.u32 2147483647, %v506
        %v508 = vadd.f32 %v497, %v507
        %509 = vset.pattern.permute.xlu0 2
        %510 = vperm.xlu0 %509, %v392
        %v511 = vpop.permute.xlu0 %510
        %v513 = vlaneseq
        %v514 = vshrl.u32 %v513, 7
        %v515 = vsub.s32 2, %v514
        %v516 = vrot.slane %v393, %v515
        %v517 = vsub.f32 %v511, %v516
        %v518 = vand.u32 2147483647, %v517
        %v519 = vadd.f32 %v508, %v518
        %520 = vset.pattern.permute.xlu0 3
        %521 = vperm.xlu0 %520, %v392
        %v522 = vpop.permute.xlu0 %521
        %v524 = vlaneseq
        %v525 = vshrl.u32 %v524, 7
        %v526 = vsub.s32 3, %v525
        %v527 = vrot.slane %v393, %v526
        %v528 = vsub.f32 %v522, %v527
        %v529 = vand.u32 2147483647, %v528
        %v530 = vadd.f32 %v519, %v529
        %v531 = vadd.f32 %v391, %v486
        %v532 = vadd.f32 %v531, %v530
        %533 = vst [vmem:[%s284] sm:$0xff] %v532
        %s534 = sand.u32 %s151, 1
        %s535 = scalar_lea.sflag [#allocation4], %s534
        %s536 = sand.u32 %s151, 1
        %s537 = smul.addr %s536, 8
        %s538 = scalar_lea.vmem [#allocation5], %s537
        // Predicated region
        $region41: #{tpu_custom_call.1} parent=35 // pred_check
          %p539 = pneg %p161
        $region42: #{tpu_custom_call.1} parent=35 // pred_check_branch
          %541 = sbr.rel (%p539) target = $region44
        $region43: #{tpu_custom_call.1} parent=35 // pred_region
          %s543 = ssub.s32 128, 128
          %544 = vsyncadd %s535, %s543
          %s545 = sadd.s32 %s26, %s25
          %s546 = smul.addr %s545, 128
          %s547 = scalar_lea.hbm %s4, %s546
          %s549 = sshll.u32 %s538, 4
          %s550 = int_to_ptr.vmem [resolvable:$true] %s549
          %552 = dma.vmem_to_hbm [thread:$0]  %s550, 128, %s547, %s535
        $region44: #{tpu_custom_call.1} parent=35 // pred_fallthru
          _
      $region36: #{tpu_custom_call.1} parent=5 // pred_fallthru
        _
      %p553 = scmp.le.s32.totalorder 2, %s16
      // Predicated region
      $region45: #{tpu_custom_call.1} parent=5 // pred_check
        %p554 = pneg %p553
      $region46: #{tpu_custom_call.1} parent=5 // pred_check_branch
        %556 = sbr.rel (%p554) target = $region48
      $region47: #{tpu_custom_call.1} parent=5 // pred_region
        %s557 = ssub.s32 %s16, 2
        // Predicated region
        $region49: #{tpu_custom_call.1} parent=47 // pred_check
          %p558 = pneg %p167
        $region50: #{tpu_custom_call.1} parent=47 // pred_check_branch
          %560 = sbr.rel (%p558) target = $region52
        $region51: #{tpu_custom_call.1} parent=47 // pred_region
          %s561 = sand.u32 %s152, 1
          %s562 = scalar_lea.sflag [#allocation4], %s561
          %s563 = sand.u32 %s152, 1
          %s564 = smul.addr %s563, 8
          %s565 = scalar_lea.vmem [#allocation5], %s564
          %566 = dma.done %s562, 128
        $region52: #{tpu_custom_call.1} parent=47 // pred_fallthru
          _
      $region48: #{tpu_custom_call.1} parent=5 // pred_fallthru
        _
    $region6: #{tpu_custom_call.1} parent=1 // loop_footer
      %s20 = sadd.s32 1, %s16
    $region7: #{tpu_custom_call.1} parent=1 // loop_footer_branch
      %15 = sbr.rel target = $region3
    $region8: #{tpu_custom_call.1} parent=1 // loop_exit
      _
    %567 = vsyncpa [#allocation3], 1
    %s568 = scalar_lea.sflag [#allocation3], 1
    %569 = vsyncpa %s568, 1
    %570 = vsyncpa [#allocation4], 1
    %s571 = scalar_lea.sflag [#allocation4], 1
    %572 = vsyncpa %s571, 1

</llo_original>
